<compile_context>
chip_gen: v7x
topology: tpu7x:2x2x1
jax: 0.10.0
libtpu: 0.0.40
codegen_flags: <defaults>
</compile_context>

<pallas_src>
import functools

import jax
import jax.numpy as jnp
from jax import lax
from jax.experimental import pallas as pl
from jax.experimental.pallas import tpu as pltpu

_LANES = 128


def _contrastive_kernel(x_ref, y_ref, *rest, temp, hard_neg_weight,
                        has_hard_negative):
    if has_hard_negative:
        z_ref, o_ref = rest
    else:
        (o_ref,) = rest
        z_ref = None

    tm = x_ref.shape[0]
    row_start = pl.multiple_of(pl.program_id(0) * tm, tm)
    inv_temp = jnp.float32(1.0 / temp)

    # Feed the MXU in native bf16 when the inputs are bf16 (f32 accumulation);
    # keep norms / softmax in f32.
    mm_dtype = jnp.bfloat16 if x_ref.dtype == jnp.bfloat16 else jnp.float32

    xf = x_ref[...].astype(jnp.float32)                        # (TM, H)
    yf = y_ref[...].astype(jnp.float32)                        # (B, H)

    # Pre-normalize rows (fold 1/temp into the query rows).
    # NOTE: PyTorch CosineSimilarity clamps the *product* of norms at 1e-8; we
    # clamp each norm at 1e-8 instead, which only differs for near-zero rows.
    x_inv = lax.rsqrt(jnp.maximum(jnp.sum(xf * xf, axis=-1, keepdims=True),
                                  jnp.float32(1e-16)))         # (TM, 1)
    y_inv = lax.rsqrt(jnp.maximum(jnp.sum(yf * yf, axis=-1, keepdims=True),
                                  jnp.float32(1e-16)))         # (B, 1)
    x_hat = (xf * (x_inv * inv_temp)).astype(mm_dtype)         # (TM, H)
    y_hat = (yf * y_inv).astype(mm_dtype)                      # (B, H)

    # sim[i, j] = <x_hat_i, y_hat_j>; contraction on last dims -> no transpose.
    sim = lax.dot_general(x_hat, y_hat,
                          dimension_numbers=(((1,), (1,)), ((), ())),
                          preferred_element_type=jnp.float32)  # (TM, B)

    # Label (diagonal) logit as a row-wise dot of the matching target rows.
    y_tile = y_ref[pl.ds(row_start, tm), :].astype(jnp.float32)   # (TM, H)
    yt_inv = lax.rsqrt(jnp.maximum(
        jnp.sum(y_tile * y_tile, axis=-1, keepdims=True), jnp.float32(1e-16)))
    diag = (jnp.sum(xf * y_tile, axis=-1, keepdims=True)
            * x_inv * yt_inv * inv_temp)                       # (TM, 1)

    if has_hard_negative:
        zf = z_ref[...].astype(jnp.float32)                    # (B, H)
        z_inv = lax.rsqrt(jnp.maximum(
            jnp.sum(zf * zf, axis=-1, keepdims=True), jnp.float32(1e-16)))
        z_hat = (zf * z_inv).astype(mm_dtype)
        sim_neg = lax.dot_general(x_hat, z_hat,
                                  dimension_numbers=(((1,), (1,)), ((), ())),
                                  preferred_element_type=jnp.float32)  # (TM, B)
        # Hard-negative weight sits at global column (B + global_row); inside
        # the negative block that is its own (shifted) diagonal.
        rows = lax.broadcasted_iota(jnp.int32, sim_neg.shape, 0) + row_start
        cols = lax.broadcasted_iota(jnp.int32, sim_neg.shape, 1)
        sim_neg = sim_neg + jnp.where(cols == rows,
                                      jnp.float32(hard_neg_weight),
                                      jnp.float32(0.0))
        m = jnp.maximum(jnp.max(sim, axis=-1, keepdims=True),
                        jnp.max(sim_neg, axis=-1, keepdims=True))
        s = (jnp.sum(jnp.exp(sim - m), axis=-1, keepdims=True)
             + jnp.sum(jnp.exp(sim_neg - m), axis=-1, keepdims=True))
    else:
        m = jnp.max(sim, axis=-1, keepdims=True)
        s = jnp.sum(jnp.exp(sim - m), axis=-1, keepdims=True)

    lse = jnp.log(s) + m                                       # (TM, 1)
    # Lane-dense store of per-row losses; mean is finished in JAX.
    o_ref[...] = jnp.broadcast_to(lse - diag, o_ref.shape)


def _row_tile(batch):
    for tm in (256, 128, 64, 32, 16, 8):
        if batch % tm == 0:
            return tm
    return batch  # odd batch: single full-extent block


def contrastive_loss(inputs, targets, hard_negative=None, *, temp=0.05,
                     hard_negative_weight=0.0, row_block=None):
    assert inputs.shape == targets.shape
    batch, hidden = inputs.shape
    tm = row_block if row_block is not None else _row_tile(batch)
    assert batch % tm == 0, "row_block must divide batch"
    num_tiles = batch // tm

    has_hn = hard_negative is not None
    kernel = functools.partial(
        _contrastive_kernel,
        temp=float(temp),
        hard_neg_weight=float(hard_negative_weight),
        has_hard_negative=has_hn,
    )

    in_specs = [
        pl.BlockSpec((tm, hidden), lambda i: (i, 0)),        # query row tile
        pl.BlockSpec((batch, hidden), lambda i: (0, 0)),     # targets resident
    ]
    args = [inputs, targets]
    if has_hn:
        # Hard negatives passed separately: no HBM concatenate in the wrapper.
        in_specs.append(pl.BlockSpec((batch, hidden), lambda i: (0, 0)))
        args.append(hard_negative)

    per_row = pl.pallas_call(
        kernel,
        out_shape=jax.ShapeDtypeStruct((batch, _LANES), jnp.float32),
        grid_spec=pltpu.PrefetchScalarGridSpec(
            num_scalar_prefetch=0,
            grid=(num_tiles,),
            in_specs=in_specs,
            out_specs=pl.BlockSpec((tm, _LANES), lambda i: (i, 0)),
        ),
        compiler_params=pltpu.CompilerParams(
            dimension_semantics=("parallel",)),   # v7x: split rows across TCs
    )(*args)
    return jnp.mean(per_row[:, 0])


def _reference_loss(inputs, targets, hard_negative=None, temp=0.05,
                    hard_negative_weight=0.0):
    """Pure-JAX reference mirroring the PyTorch forward."""
    def cos(a, b):
        num = jnp.sum(a * b, axis=-1)
        den = jnp.maximum(jnp.linalg.norm(a, axis=-1) *
                          jnp.linalg.norm(b, axis=-1), 1e-8)
        return num / den

    sim = cos(inputs[:, None, :], targets[None, :, :]) / temp
    if hard_negative is not None:
        neg = cos(inputs[:, None, :], hard_negative[None, :, :]) / temp
        sim = jnp.concatenate([sim, neg], axis=1)
        b = inputs.shape[0]
        w = jnp.zeros_like(sim).at[jnp.arange(b), b + jnp.arange(b)].set(
            hard_negative_weight)
        sim = sim + w
    labels = jnp.arange(inputs.shape[0])
    logp = jax.nn.log_softmax(sim, axis=-1)
    return -jnp.mean(logp[jnp.arange(inputs.shape[0]), labels])


if __name__ == "__main__":
    key = jax.random.PRNGKey(0)
    k1, k2, k3 = jax.random.split(key, 3)

    B, H = 8, 32
    x = jax.random.normal(k1, (B, H), dtype=jnp.float32)
    y = jax.random.normal(k2, (B, H), dtype=jnp.float32)
    z = jax.random.normal(k3, (B, H), dtype=jnp.float32)

    # No hard negatives (default path)
    loss = jax.block_until_ready(contrastive_loss(x, y, temp=0.05))
    ref = _reference_loss(x, y, temp=0.05)
    assert jnp.allclose(loss, ref, atol=1e-4, rtol=1e-4), (loss, ref)

    # With hard negatives
    loss_hn = jax.block_until_ready(
        contrastive_loss(x, y, z, temp=0.05, hard_negative_weight=1.0))
    ref_hn = _reference_loss(x, y, z, temp=0.05, hard_negative_weight=1.0)
    assert jnp.allclose(loss_hn, ref_hn, atol=1e-4, rtol=1e-4), (loss_hn, ref_hn)

    # Multi-row-tile path (grid > 1, parallel row axis), with hard negatives.
    B2 = 16
    k4, k5, k6 = jax.random.split(jax.random.PRNGKey(1), 3)
    x2 = jax.random.normal(k4, (B2, H), dtype=jnp.float32)
    y2 = jax.random.normal(k5, (B2, H), dtype=jnp.float32)
    z2 = jax.random.normal(k6, (B2, H), dtype=jnp.float32)
    loss_t = jax.block_until_ready(
        contrastive_loss(x2, y2, z2, temp=0.05, hard_negative_weight=0.5,
                         row_block=8))
    ref_t = _reference_loss(x2, y2, z2, temp=0.05, hard_negative_weight=0.5)
    assert jnp.allclose(loss_t, ref_t, atol=1e-4, rtol=1e-4), (loss_t, ref_t)

    print("KERNEL_OK")
</pallas_src>

<mosaic_0001>
module attributes {stable_mosaic.version = 11 : i64} {
  func.func @_contrastive_kernel(%arg0: i32, %arg1: memref<8x32xf32, #tpu.memory_space<vmem>>, %arg2: memref<8x32xf32, #tpu.memory_space<vmem>>, %arg3: memref<8x128xf32, #tpu.memory_space<vmem>>) attributes {dimension_semantics = [#tpu.dimension_semantics<parallel>], iteration_bounds = array<i64: 1>, scalar_prefetch = 0 : i64, scratch_operands = 0 : i64, tpu.core_type = #tpu.core_type<tc>, window_params = [{transform_indices = @transform_0, window_bounds = array<i64: 8, 32>}, {pipeline_mode = #tpu.pipeline_mode<synchronous>, transform_indices = @transform_1, window_bounds = array<i64: 8, 32>}, {transform_indices = @transform_2, window_bounds = array<i64: 8, 128>}]} {
    %c8_i32 = arith.constant 8 : i32
    %0 = arith.muli %arg0, %c8_i32 : i32
    %1 = tpu.assume_multiple %0, 8 : i32
    %c0 = arith.constant 0 : index
    %c0_0 = arith.constant 0 : index
    %2 = vector.load %arg1[%c0, %c0_0] : memref<8x32xf32, #tpu.memory_space<vmem>>, vector<8x32xf32>
    %c0_1 = arith.constant 0 : index
    %c0_2 = arith.constant 0 : index
    %3 = vector.load %arg2[%c0_1, %c0_2] : memref<8x32xf32, #tpu.memory_space<vmem>>, vector<8x32xf32>
    %4 = arith.mulf %2, %2 : vector<8x32xf32>
    %cst = arith.constant dense<0.000000e+00> : vector<8xf32>
    %5 = vector.multi_reduction <add>, %4, %cst [1] : vector<8x32xf32> to vector<8xf32>
    %6 = vector.shape_cast %5 : vector<8xf32> to vector<8x1xf32>
    %cst_3 = arith.constant 1.000000e-16 : f32
    %7 = vector.broadcast %cst_3 : f32 to vector<8x1xf32>
    %8 = arith.maximumf %6, %7 : vector<8x1xf32>
    %9 = math.rsqrt %8 : vector<8x1xf32>
    %10 = arith.mulf %3, %3 : vector<8x32xf32>
    %cst_4 = arith.constant dense<0.000000e+00> : vector<8xf32>
    %11 = vector.multi_reduction <add>, %10, %cst_4 [1] : vector<8x32xf32> to vector<8xf32>
    %12 = vector.shape_cast %11 : vector<8xf32> to vector<8x1xf32>
    %cst_5 = arith.constant 1.000000e-16 : f32
    %13 = vector.broadcast %cst_5 : f32 to vector<8x1xf32>
    %14 = arith.maximumf %12, %13 : vector<8x1xf32>
    %15 = math.rsqrt %14 : vector<8x1xf32>
    %cst_6 = arith.constant 2.000000e+01 : f32
    %16 = vector.broadcast %cst_6 : f32 to vector<8x1xf32>
    %17 = arith.mulf %9, %16 : vector<8x1xf32>
    %18 = vector.broadcast %17 : vector<8x1xf32> to vector<8x32xf32>
    %19 = arith.mulf %2, %18 : vector<8x32xf32>
    %20 = vector.broadcast %15 : vector<8x1xf32> to vector<8x32xf32>
    %21 = arith.mulf %3, %20 : vector<8x32xf32>
    %cst_7 = arith.constant dense<0.000000e+00> : vector<8x8xf32>
    %22 = tpu.matmul %19, %21, %cst_7 {dimension_numbers = #tpu.dot_dimension_numbers<[1], [1], [0], [0], [0, 0, 1, 0], [], []>} : vector<8x32xf32>, vector<8x32xf32>, vector<8x8xf32> -> vector<8x8xf32>
    %23 = arith.index_cast %1 : i32 to index
    %c0_8 = arith.constant 0 : index
    %24 = vector.load %arg2[%23, %c0_8] : memref<8x32xf32, #tpu.memory_space<vmem>>, vector<8x32xf32>
    %25 = arith.mulf %24, %24 : vector<8x32xf32>
    %cst_9 = arith.constant dense<0.000000e+00> : vector<8xf32>
    %26 = vector.multi_reduction <add>, %25, %cst_9 [1] : vector<8x32xf32> to vector<8xf32>
    %27 = vector.shape_cast %26 : vector<8xf32> to vector<8x1xf32>
    %cst_10 = arith.constant 1.000000e-16 : f32
    %28 = vector.broadcast %cst_10 : f32 to vector<8x1xf32>
    %29 = arith.maximumf %27, %28 : vector<8x1xf32>
    %30 = math.rsqrt %29 : vector<8x1xf32>
    %31 = arith.mulf %2, %24 : vector<8x32xf32>
    %cst_11 = arith.constant dense<0.000000e+00> : vector<8xf32>
    %32 = vector.multi_reduction <add>, %31, %cst_11 [1] : vector<8x32xf32> to vector<8xf32>
    %33 = vector.shape_cast %32 : vector<8xf32> to vector<8x1xf32>
    %34 = arith.mulf %33, %9 : vector<8x1xf32>
    %35 = arith.mulf %34, %30 : vector<8x1xf32>
    %cst_12 = arith.constant 2.000000e+01 : f32
    %36 = vector.broadcast %cst_12 : f32 to vector<8x1xf32>
    %37 = arith.mulf %35, %36 : vector<8x1xf32>
    %cst_13 = arith.constant dense<0xFF800000> : vector<8xf32>
    %38 = vector.multi_reduction <maximumf>, %22, %cst_13 [1] : vector<8x8xf32> to vector<8xf32>
    %39 = vector.shape_cast %38 : vector<8xf32> to vector<8x1xf32>
    %40 = vector.broadcast %39 : vector<8x1xf32> to vector<8x8xf32>
    %41 = arith.subf %22, %40 : vector<8x8xf32>
    %42 = math.exp %41 : vector<8x8xf32>
    %cst_14 = arith.constant dense<0.000000e+00> : vector<8xf32>
    %43 = vector.multi_reduction <add>, %42, %cst_14 [1] : vector<8x8xf32> to vector<8xf32>
    %44 = vector.shape_cast %43 : vector<8xf32> to vector<8x1xf32>
    %45 = math.log %44 : vector<8x1xf32>
    %46 = arith.addf %45, %39 : vector<8x1xf32>
    %47 = arith.subf %46, %37 : vector<8x1xf32>
    %48 = vector.shape_cast %47 : vector<8x1xf32> to vector<8x1xf32>
    %49 = vector.broadcast %48 : vector<8x1xf32> to vector<8x128xf32>
    %c0_15 = arith.constant 0 : index
    %c0_16 = arith.constant 0 : index
    %50 = vector.load %arg3[%c0_15, %c0_16] : memref<8x128xf32, #tpu.memory_space<vmem>>, vector<8x128xf32>
    tpu.vector_store %arg3[%c0_15, %c0_16], %49 {strides = array<i32>} : memref<8x128xf32, #tpu.memory_space<vmem>>, vector<8x128xf32>,
    return
  }
  func.func @transform_0(%arg0: i32) -> (i32, i32) {
    %c0_i32 = arith.constant 0 : i32
    %c0_i32_0 = arith.constant 0 : i32
    return %arg0, %c0_i32 : i32, i32
  }
  func.func @transform_1(%arg0: i32) -> (i32, i32) {
    %c0_i32 = arith.constant 0 : i32
    %c0_i32_0 = arith.constant 0 : i32
    %c0_i32_1 = arith.constant 0 : i32
    return %c0_i32, %c0_i32_0 : i32, i32
  }
  func.func @transform_2(%arg0: i32) -> (i32, i32) {
    %c0_i32 = arith.constant 0 : i32
    %c0_i32_0 = arith.constant 0 : i32
    return %arg0, %c0_i32 : i32, i32
  }
}

</mosaic_0001>

<llo_original>
// kernel: tpu_custom_call.1
$region0: #{tpu_custom_call.1}
  #allocation0 [shape = 'u32[]', space=smem, size = 0x4, offset = 0x4, fixed_abs, tag = 'smem constant byte address 0x4 - core index']
  #allocation1 [shape = 'u32[144,128]{1,0:T(1,128)}', space=vmem, size = 0x12000, scoped, tag = 'internal scratch']
  %s0 = inlined_call_operand.hbm [shape: f32[8,32], index: 0, kind: input, shape index: {}]
  %s1 = inlined_call_operand.hbm [shape: f32[8,32], index: 1, kind: input, shape index: {}]
  %s2 = inlined_call_operand.hbm [shape: f32[8,128], index: 2, kind: output, shape index: {}]
  %s3 = sld [smem:[#allocation0]]
  $region26: #{tpu_custom_call.1} parent=0
    _
  %s5 = ssub.s32 1, %s3
  %s6 = scalar_select 0, %s5, %s3
  $region1: #{tpu_custom_call.1} parent=0
    #allocation2 [shape = 'u8[4096]{0}', space=vmem, size = 0x1000, scoped, tag = 'input window, operand 0, single buffered']
    #allocation3 [shape = 's32[1]{0}', space=sflag, size = 0x4, scoped, tag = 'scoped memory for tpu_custom_call.1']
    #allocation4 [shape = 's32[1]{0}', space=sflag, size = 0x4, scoped, tag = 'scoped memory for tpu_custom_call.1']
    #allocation5 [shape = 'u8[4096]{0}', space=vmem, size = 0x1000, scoped, tag = 'input window, operand 1, single buffered']
    #allocation6 [shape = 's32[1]{0}', space=sflag, size = 0x4, scoped, tag = 'scoped memory for tpu_custom_call.1']
    #allocation7 [shape = 'u8[4096]{0}', space=vmem, size = 0x1000, scoped, tag = 'output window, operand 0, single buffered']
    %7 = vsyncpa [#allocation3], 0
    %8 = vsyncpa [#allocation6], 0
    %9 = vsyncpa [#allocation4], 0
    // Predicated region
    $region2: #{tpu_custom_call.1} parent=1 // pred_check
      _
    $region3: #{tpu_custom_call.1} parent=1 // pred_check_branch
      %11 = sbr.rel (0) target = $region5
    $region4: #{tpu_custom_call.1} parent=1 // pred_region
      %s13 = ssub.s32 128, 128
      %14 = vsyncadd [#allocation3], %s13
      %s16 = sshll.u32 [#allocation2], 4
      %s17 = int_to_ptr.vmem [resolvable:$true] %s16
      %19 = dma.hbm_to_vmem [thread:$0]  %s0, 128, %s17, [#allocation3]
    $region5: #{tpu_custom_call.1} parent=1 // pred_fallthru
      _
    // Predicated region
    $region6: #{tpu_custom_call.1} parent=1 // pred_check
      _
    $region7: #{tpu_custom_call.1} parent=1 // pred_check_branch
      %21 = sbr.rel (0) target = $region9
    $region8: #{tpu_custom_call.1} parent=1 // pred_region
      %s23 = ssub.s32 128, 128
      %24 = vsyncadd [#allocation6], %s23
      %s26 = sshll.u32 [#allocation5], 4
      %s27 = int_to_ptr.vmem [resolvable:$true] %s26
      %29 = dma.hbm_to_vmem [thread:$0]  %s1, 128, %s27, [#allocation6]
    $region9: #{tpu_custom_call.1} parent=1 // pred_fallthru
      _
    // Predicated region
    $region10: #{tpu_custom_call.1} parent=1 // pred_check
      _
    $region11: #{tpu_custom_call.1} parent=1 // pred_check_branch
      %31 = sbr.rel (0) target = $region13
    $region12: #{tpu_custom_call.1} parent=1 // pred_region
      %32 = dma.done [#allocation3], 128
    $region13: #{tpu_custom_call.1} parent=1 // pred_fallthru
      _
    // Predicated region
    $region14: #{tpu_custom_call.1} parent=1 // pred_check
      _
    $region15: #{tpu_custom_call.1} parent=1 // pred_check_branch
      %34 = sbr.rel (0) target = $region17
    $region16: #{tpu_custom_call.1} parent=1 // pred_region
      %35 = dma.done [#allocation6], 128
    $region17: #{tpu_custom_call.1} parent=1 // pred_fallthru
      _
    %s36 = smul.u32 0, 8
    %v37 = vld [vmem:[#allocation2] sm:$0xff]
    %v38 = vld [vmem:[#allocation5] sm:$0xff]
    %v39 = vmul.f32 %v37, %v37
    %vm40 = vcmask 261120
    %v41 = vsel %vm40, %v39, 0.0
    %42 = vadd.xlane.f32.xlu0 %v41
    %v43 = vpop.xlane.xlu0 %42
    %v44 = vmax.f32 %v43, 1e-16
    %v45 = vrsqrt.pop %v44
    %v46 = vmul.f32 %v38, %v38
    %v47 = vsel %vm40, %v46, 0.0
    %48 = vadd.xlane.f32.xlu0 %v47
    %v49 = vpop.xlane.xlu0 %48
    %v50 = vmax.f32 %v49, 1e-16
    %v51 = vrsqrt.pop %v50
    %v52 = vmul.f32 %v45, 20.0
    %v53 = vmul.f32 %v37, %v52
    %v54 = vmul.f32 %v38, %v51
    %v56 = vsel %vm40, %v53, 0
    %v59 = vsel %vm40, %v54, 0
    %61 = vmatprep.subr.mxu0 0.0
    %62 = vmatpush1.xpose.msra.mxu0 %v59
    %63 = vmatprep.subr.mxu0 0.0
    %64 = vmatpush1.xpose.msra.mxu0 0.0
    %65 = vmatprep.subr.mxu0 0.0
    %66 = vmatpush1.xpose.msra.mxu0 0.0
    %67 = vmatprep.subr.mxu0 0.0
    %68 = vmatpush1.xpose.msra.mxu0 0.0
    %69 = vmatprep.subr.mxu0 0.0
    %70 = vmatpush1.xpose.msra.mxu0 0.0
    %71 = vmatprep.subr.mxu0 0.0
    %72 = vmatpush1.xpose.msra.mxu0 0.0
    %73 = vmatprep.subr.mxu0 0.0
    %74 = vmatpush1.xpose.msra.mxu0 0.0
    %75 = vmatprep.subr.mxu0 0.0
    %76 = vmatpush1.xpose.msra.mxu0 0.0
    %77 = vmatprep.subr.mxu0 0.0
    %78 = vmatpush1.xpose.msra.mxu0 0.0
    %79 = vmatprep.subr.mxu0 0.0
    %80 = vmatpush1.xpose.msra.mxu0 0.0
    %81 = vmatprep.subr.mxu0 0.0
    %82 = vmatpush1.xpose.msra.mxu0 0.0
    %83 = vmatprep.subr.mxu0 0.0
    %84 = vmatpush1.xpose.msra.mxu0 0.0
    %85 = vmatprep.subr.mxu0 0.0
    %86 = vmatpush1.xpose.msra.mxu0 0.0
    %87 = vmatprep.subr.mxu0 0.0
    %88 = vmatpush1.xpose.msra.mxu0 0.0
    %89 = vmatprep.subr.mxu0 0.0
    %90 = vmatpush1.xpose.msra.mxu0 0.0
    %91 = vmatprep.subr.mxu0 0.0
    %92 = vmatpush1.xpose.msra.mxu0 0.0
    %93 = vmatprep.subr.mxu0 0.0
    %94 = vmatpush1.xpose.msra.mxu0 0.0
    %95 = vmatprep.subr.mxu0 0.0
    %96 = vmatpush1.xpose.msra.mxu0 0.0
    %97 = vmatprep.subr.mxu0 0.0
    %98 = vmatpush1.xpose.msra.mxu0 0.0
    %99 = vmatprep.subr.mxu0 0.0
    %100 = vmatpush1.xpose.msra.mxu0 0.0
    %101 = vmatprep.subr.mxu0 0.0
    %102 = vmatpush1.xpose.msra.mxu0 0.0
    %103 = vmatprep.subr.mxu0 0.0
    %104 = vmatpush1.xpose.msra.mxu0 0.0
    %105 = vmatprep.subr.mxu0 0.0
    %106 = vmatpush1.xpose.msra.mxu0 0.0
    %107 = vmatprep.subr.mxu0 0.0
    %108 = vmatpush1.xpose.msra.mxu0 0.0
    %109 = vmatprep.subr.mxu0 0.0
    %110 = vmatpush1.xpose.msra.mxu0 0.0
    %111 = vmatprep.subr.mxu0 0.0
    %112 = vmatpush1.xpose.msra.mxu0 0.0
    %113 = vmatprep.subr.mxu0 0.0
    %114 = vmatpush1.xpose.msra.mxu0 0.0
    %115 = vmatprep.subr.mxu0 0.0
    %116 = vmatpush1.xpose.msra.mxu0 0.0
    %117 = vmatprep.subr.mxu0 0.0
    %118 = vmatpush1.xpose.msra.mxu0 0.0
    %119 = vmatprep.subr.mxu0 0.0
    %120 = vmatpush1.xpose.msra.mxu0 0.0
    %121 = vmatprep.subr.mxu0 0.0
    %122 = vmatpush1.xpose.msra.mxu0 0.0
    %123 = vmatprep.subr.mxu0 0.0
    %124 = vmatpush1.xpose.msra.mxu0 0.0
    %125 = vmatprep.mubr.f32.mxu0 0.0
    %126 = vmatmul.mubr.f32.gmra.mrb[0].mxu0 %v56
    %v127 = vpop.f32.mrb[0].mxu0
    %v128 = vadd.f32 0.0, %v127
    %v129 = vpop.f32.mrb[0].mxu0
    %130 = vdwg.mxu0
    %s131 = scalar_lea.vmem [#allocation5], %s36
    %v132 = vld [vmem:[%s131] sm:$0xff]
    %v133 = vmul.f32 %v132, %v132
    %v134 = vsel %vm40, %v133, 0.0
    %135 = vadd.xlane.f32.xlu0 %v134
    %v136 = vpop.xlane.xlu0 %135
    %v137 = vmax.f32 %v136, 1e-16
    %v138 = vrsqrt.pop %v137
    %v139 = vmul.f32 %v37, %v132
    %v140 = vsel %vm40, %v139, 0.0
    %141 = vadd.xlane.f32.xlu0 %v140
    %v142 = vpop.xlane.xlu0 %141
    %v143 = vmul.f32 %v142, %v45
    %v144 = vmul.f32 %v143, %v138
    %v145 = vmul.f32 %v144, 20.0
    %vm146 = vcmask 64512
    %v147 = vsel %vm146, %v128, -inf
    %148 = vmax.xlane.f32.xlu0 %v147
    %v149 = vpop.xlane.xlu0 %148
    %v150 = vsub.f32 %v128, %v149
    %v151 = vmul.f32 %v150, 1.442695
    %v152 = vpow.pop %v151
    %v153 = vsel %vm146, %v152, 0.0
    %154 = vadd.xlane.f32.xlu0 %v153
    %v155 = vpop.xlane.xlu0 %154
    %v156 = vlog2.pop %v155
    %v157 = vmul.f32 %v156, 0.6931472
    %v158 = vadd.f32 %v157, %v149
    %v159 = vsub.f32 %v158, %v145
    %160 = vst [vmem:[#allocation7] sm:$0xff] %v159
    // Predicated region
    $region18: #{tpu_custom_call.1} parent=1 // pred_check
      _
    $region19: #{tpu_custom_call.1} parent=1 // pred_check_branch
      %162 = sbr.rel (0) target = $region21
    $region20: #{tpu_custom_call.1} parent=1 // pred_region
      %s164 = ssub.s32 128, 128
      %165 = vsyncadd [#allocation4], %s164
      %s167 = sshll.u32 [#allocation7], 4
      %s168 = int_to_ptr.vmem [resolvable:$true] %s167
      %170 = dma.vmem_to_hbm [thread:$0]  %s168, 128, %s2, [#allocation4]
    $region21: #{tpu_custom_call.1} parent=1 // pred_fallthru
      _
    // Predicated region
    $region22: #{tpu_custom_call.1} parent=1 // pred_check
      _
    $region23: #{tpu_custom_call.1} parent=1 // pred_check_branch
      %172 = sbr.rel (0) target = $region25
    $region24: #{tpu_custom_call.1} parent=1 // pred_region
      %173 = dma.done [#allocation4], 128
    $region25: #{tpu_custom_call.1} parent=1 // pred_fallthru
      _
    %174 = vsyncpa [#allocation3], 1
    %175 = vsyncpa [#allocation6], 1
    %176 = vsyncpa [#allocation4], 1

</llo_original>
